<compile_context>
chip_gen: v7x
topology: tpu7x:2x2x1
jax: 0.10.0
libtpu: 0.0.40
codegen_flags: <defaults>
</compile_context>

<pallas_src>
import jax
import jax.numpy as jnp
from jax.experimental import pallas as pl
from jax.experimental.pallas import tpu as pltpu


# ----------------------------- kernels --------------------------------------

def _softmax_from_logits(logits):
    # Row-wise softmax.  Denominator via approx reciprocal -> EUP slot, VALU stays free.
    m = jnp.max(logits, axis=1, keepdims=True)
    e = jnp.exp(logits - m)
    s = jnp.sum(e, axis=1, keepdims=True)
    return e * pl.reciprocal(s, approx=True)


def _pred_kernel(xa_ref, wb_ref, pred_ref):
    logits = jnp.dot(xa_ref[...], wb_ref[...], preferred_element_type=jnp.float32)
    pred_ref[...] = _softmax_from_logits(logits).astype(pred_ref.dtype)


def _fused_kernel(xa_ref, wb_ref, y_ref, pred_ref, loss_ref):
    # Single pass: one matmul (bias folded into wb), softmax once, both outputs.
    logits = jnp.dot(xa_ref[...], wb_ref[...], preferred_element_type=jnp.float32)
    pred = _softmax_from_logits(logits)
    pred_ref[...] = pred.astype(pred_ref.dtype)

    # cross_entropy(pred, y): PyTorch applies log_softmax to its first argument, so the
    # log_softmax lands on top of the softmax probabilities (module semantics, kept as-is).
    # pred is in [0,1] -> exp(pred) <= e, so the usual max-subtraction is unnecessary.
    lse = jnp.log(jnp.sum(jnp.exp(pred), axis=1, keepdims=True))   # (B, 1)
    logp = pred - lse                                              # (B, 5)

    # In-kernel one-hot: iota over the class axis compared against the (B,1) int32 labels.
    classes = jax.lax.broadcasted_iota(jnp.int32, logp.shape, 1)   # (B, 5)
    onehot = (classes == y_ref[...]).astype(jnp.float32)
    nll = -jnp.sum(onehot * logp, axis=1, keepdims=True)           # (B, 1), stays 2-D
    loss_ref[0] = jnp.sum(nll) * (1.0 / nll.shape[0])              # mean -> 1-D SMEM scalar


# ----------------------------- wrappers -------------------------------------

def _full_spec(shape):
    # Small problem: single grid point, whole array resident in VMEM.
    return pl.BlockSpec(shape, lambda: (0,) * len(shape))


def prepare_inputs(x, wt, b):
    """One-time init: fold the bias into the weight and append a ones column to x.

    Do this ONCE outside the training loop -- the per-step kernel then sees exactly two
    tensor streams (x_aug, wb) plus the tiny label stream.
    """
    B = x.shape[0]
    xa = jnp.concatenate([x, jnp.ones((B, 1), x.dtype)], axis=1)       # (B, C+1)
    wb = jnp.concatenate([wt, b.reshape(1, -1).astype(wt.dtype)], 0)   # (C+1, N)
    return xa, wb


def _cost_estimate(B, Cp1, N):
    flops = 2 * B * Cp1 * N + 10 * B * N                # matmul + elementwise softmax/CE
    transcendentals = 2 * B * N + 2 * B                 # exp (x2), log, reciprocal
    bytes_accessed = 4 * (B * Cp1 + Cp1 * N + B + B * N + 1)
    return pl.CostEstimate(flops=flops, transcendentals=transcendentals,
                           bytes_accessed=bytes_accessed)


def live_city_train_step(xa, wb, y2d):
    """One fused launch. xa:(B,C+1) f32, wb:(C+1,N) f32, y2d:(B,1) int32.

    Returns (pred (B, N) f32, loss scalar f32).
    """
    B, Cp1 = xa.shape
    N = wb.shape[1]
    pred, loss = pl.pallas_call(
        _fused_kernel,
        out_shape=(jax.ShapeDtypeStruct((B, N), jnp.float32),
                   jax.ShapeDtypeStruct((1,), jnp.float32)),
        grid=(),
        in_specs=[_full_spec((B, Cp1)), _full_spec((Cp1, N)), _full_spec((B, 1))],
        out_specs=(pl.BlockSpec((B, N), lambda: (0, 0)),
                   pl.BlockSpec(memory_space=pltpu.MemorySpace.SMEM)),
        cost_estimate=_cost_estimate(B, Cp1, N),
    )(xa, wb, y2d)
    return pred, loss[0]


def live_city_forward(xa, wb, y2d=None):
    """Module-faithful forward: softmax probs if y is None, else scalar CE loss."""
    B, Cp1 = xa.shape
    N = wb.shape[1]
    if y2d is None:
        return pl.pallas_call(
            _pred_kernel,
            out_shape=jax.ShapeDtypeStruct((B, N), jnp.float32),
            grid=(),
            in_specs=[_full_spec((B, Cp1)), _full_spec((Cp1, N))],
            out_specs=pl.BlockSpec((B, N), lambda: (0, 0)),
            cost_estimate=_cost_estimate(B, Cp1, N),
        )(xa, wb)
    return live_city_train_step(xa, wb, y2d)[1]


# ----------------------------- main -----------------------------------------

if __name__ == "__main__":
    B = 8            # batch
    CITY_NUM = 16    # input features
    NUM_CLASSES = 5  # nn.Linear(city_num, 5)

    key = jax.random.PRNGKey(0)
    kx, kw, kb, ky = jax.random.split(key, 4)

    x = jax.random.normal(kx, (B, CITY_NUM), dtype=jnp.float32)
    # Deterministic parameter init (synthetic, mimics nn.Linear uniform bound 1/sqrt(fan_in)).
    bound = 1.0 / (CITY_NUM ** 0.5)
    wt = jax.random.uniform(kw, (CITY_NUM, NUM_CLASSES), jnp.float32, -bound, bound)
    b = jax.random.uniform(kb, (1, NUM_CLASSES), jnp.float32, -bound, bound)
    # Labels produced directly in the kernel-ready (B, 1) int32 layout — no per-step reshape.
    y2d = jax.random.randint(ky, (B, 1), 0, NUM_CLASSES, dtype=jnp.int32)

    # One-time init: fold bias into the weight, append ones column to x.
    xa, wb = prepare_inputs(x, wt, b)

    # Amortize per-call overhead by keeping the whole step under one jit.
    step = jax.jit(live_city_train_step)

    pred, loss = step(xa, wb, y2d)
    jax.block_until_ready(pred)
    jax.block_until_ready(loss)

    # Inference path (y is None) exercised once as well.
    pred_only = jax.jit(lambda a, w: live_city_forward(a, w))(xa, wb)
    jax.block_until_ready(pred_only)

    assert pred.shape == (B, NUM_CLASSES)
    assert pred_only.shape == (B, NUM_CLASSES)
    assert loss.shape == ()
    assert bool(jnp.isfinite(loss))
    # approx-reciprocal softmax: rows sum to ~1 within ~1e-3, not exactly 1.
    assert bool(jnp.all(jnp.abs(jnp.sum(pred, axis=1) - 1.0) < 1e-2))
    print("KERNEL_OK")
</pallas_src>

<mosaic_0001>
module attributes {stable_mosaic.version = 11 : i64} {
  func.func @_fused_kernel(%arg0: memref<8x17xf32, #tpu.memory_space<vmem>>, %arg1: memref<17x5xf32, #tpu.memory_space<vmem>>, %arg2: memref<8x1xi32, #tpu.memory_space<vmem>>, %arg3: memref<8x5xf32, #tpu.memory_space<vmem>>, %arg4: memref<1xf32, #tpu.memory_space<smem>>) attributes {dimension_semantics = [], scalar_prefetch = 0 : i64, scratch_operands = 0 : i64, tpu.core_type = #tpu.core_type<tc>} {
    %c0 = arith.constant 0 : index
    %c0_0 = arith.constant 0 : index
    %0 = vector.load %arg0[%c0, %c0_0] : memref<8x17xf32, #tpu.memory_space<vmem>>, vector<8x17xf32>
    %c0_1 = arith.constant 0 : index
    %c0_2 = arith.constant 0 : index
    %1 = vector.load %arg1[%c0_1, %c0_2] : memref<17x5xf32, #tpu.memory_space<vmem>>, vector<17x5xf32>
    %cst = arith.constant dense<0.000000e+00> : vector<8x5xf32>
    %2 = tpu.matmul %0, %1, %cst {dimension_numbers = #tpu.dot_dimension_numbers<[1], [0], [0], [1], [0, 0, 1, 1], [], []>} : vector<8x17xf32>, vector<17x5xf32>, vector<8x5xf32> -> vector<8x5xf32>
    %cst_3 = arith.constant dense<0xFF800000> : vector<8xf32>
    %3 = vector.multi_reduction <maximumf>, %2, %cst_3 [1] : vector<8x5xf32> to vector<8xf32>
    %4 = vector.shape_cast %3 : vector<8xf32> to vector<8x1xf32>
    %5 = vector.broadcast %4 : vector<8x1xf32> to vector<8x5xf32>
    %6 = arith.subf %2, %5 : vector<8x5xf32>
    %7 = math.exp %6 : vector<8x5xf32>
    %cst_4 = arith.constant dense<0.000000e+00> : vector<8xf32>
    %8 = vector.multi_reduction <add>, %7, %cst_4 [1] : vector<8x5xf32> to vector<8xf32>
    %9 = vector.shape_cast %8 : vector<8xf32> to vector<8x1xf32>
    %10 = tpu.reciprocal %9 {approx = true} : vector<8x1xf32> -> vector<8x1xf32>
    %11 = vector.broadcast %10 : vector<8x1xf32> to vector<8x5xf32>
    %12 = arith.mulf %7, %11 : vector<8x5xf32>
    %c0_5 = arith.constant 0 : index
    %c0_6 = arith.constant 0 : index
    %13 = vector.load %arg3[%c0_5, %c0_6] : memref<8x5xf32, #tpu.memory_space<vmem>>, vector<8x5xf32>
    tpu.vector_store %arg3[%c0_5, %c0_6], %12 {strides = array<i32>} : memref<8x5xf32, #tpu.memory_space<vmem>>, vector<8x5xf32>,
    %14 = math.exp %12 : vector<8x5xf32>
    %cst_7 = arith.constant dense<0.000000e+00> : vector<8xf32>
    %15 = vector.multi_reduction <add>, %14, %cst_7 [1] : vector<8x5xf32> to vector<8xf32>
    %16 = vector.shape_cast %15 : vector<8xf32> to vector<8x1xf32>
    %17 = math.log %16 : vector<8x1xf32>
    %18 = vector.broadcast %17 : vector<8x1xf32> to vector<8x5xf32>
    %19 = arith.subf %12, %18 : vector<8x5xf32>
    %20 = tpu.iota {dimensions = array<i32: 1>} : vector<8x5xi32>
    %c0_8 = arith.constant 0 : index
    %c0_9 = arith.constant 0 : index
    %21 = vector.load %arg2[%c0_8, %c0_9] : memref<8x1xi32, #tpu.memory_space<vmem>>, vector<8x1xi32>
    %22 = vector.broadcast %21 : vector<8x1xi32> to vector<8x5xi32>
    %23 = arith.cmpi eq, %20, %22 : vector<8x5xi32>
    %24 = arith.extui %23 : vector<8x5xi1> to vector<8x5xi32>
    %25 = arith.sitofp %24 : vector<8x5xi32> to vector<8x5xf32>
    %26 = arith.mulf %25, %19 : vector<8x5xf32>
    %cst_10 = arith.constant dense<0.000000e+00> : vector<8xf32>
    %27 = vector.multi_reduction <add>, %26, %cst_10 [1] : vector<8x5xf32> to vector<8xf32>
    %28 = vector.shape_cast %27 : vector<8xf32> to vector<8x1xf32>
    %cst_11 = arith.constant 0.000000e+00 : f32
    %29 = vector.broadcast %cst_11 : f32 to vector<8x1xf32>
    %30 = arith.subf %29, %28 : vector<8x1xf32>
    %31 = vector.shape_cast %30 : vector<8x1xf32> to vector<1x8x1xf32>
    %cst_12 = arith.constant dense<0.000000e+00> : vector<1xf32>
    %32 = vector.multi_reduction <add>, %31, %cst_12 [1, 2] : vector<1x8x1xf32> to vector<1xf32>
    %33 = vector.shape_cast %32 : vector<1xf32> to vector<1x1x1xf32>
    %34 = vector.extract %33[0, 0, 0] : f32 from vector<1x1x1xf32>
    %cst_13 = arith.constant 1.250000e-01 : f32
    %35 = arith.mulf %34, %cst_13 : f32
    %c0_14 = arith.constant 0 : index
    %36 = memref.load %arg4[%c0_14] : memref<1xf32, #tpu.memory_space<smem>>
    memref.store %35, %arg4[%c0_14] : memref<1xf32, #tpu.memory_space<smem>>
    return
  }
}

</mosaic_0001>

<llo_original>
// kernel: live_city_train_step.1
$region0: #{live_city_train_step.1}
  #allocation0 [shape = 'u32[]', space=smem, size = 0x4, offset = 0x4, fixed_abs, tag = 'smem constant byte address 0x4 - core index']
  #allocation1 [shape = 'u32[144,128]{1,0:T(1,128)}', space=vmem, size = 0x12000, scoped, tag = 'internal scratch']
  %s0 = inlined_call_operand.vmem [shape: f32[8,17], index: 0, kind: input, shape index: {}]
  %s1 = inlined_call_operand.vmem [shape: f32[17,5], index: 1, kind: input, shape index: {}]
  %s2 = inlined_call_operand.vmem [shape: s32[8,1], index: 2, kind: input, shape index: {}]
  %s3 = inlined_call_operand.hbm [shape: f32[8,5], index: 3, kind: output, shape index: {0}]
  %s4 = inlined_call_operand.hbm [shape: f32[1], index: 4, kind: output, shape index: {1}]
  %5 = xla_tuple %s3, %s4
  %s6 = sld [smem:[#allocation0]]
  $region30: #{live_city_train_step.1} parent=0
    _
  %s8 = ssub.s32 1, %s6
  %s9 = scalar_select 0, %s8, %s6
  $region1: #{live_city_train_step.1} parent=0
    #allocation2 [shape = 'u8[4096]{0}', space=vmem, size = 0x1000, scoped, tag = 'output window, operand 0, single buffered']
    #allocation3 [shape = 's32[1]{0}', space=sflag, size = 0x4, scoped, tag = 'scoped memory for live_city_train_step.1']
    #allocation4 [shape = 's32[1]{0}', space=sflag, size = 0x4, scoped, tag = 'scoped memory for live_city_train_step.1']
    #allocation5 [shape = 'u8[512]{0}', space=smem, size = 0x200, scoped, tag = 'output window, operand 1, single buffered']
    %10 = vsyncpa [#allocation3], 0
    %11 = vsyncpa [#allocation4], 0
    // Predicated region
    $region2: #{live_city_train_step.1} parent=1 // pred_check
      _
    $region3: #{live_city_train_step.1} parent=1 // pred_check_branch
      %13 = sbr.rel (0) target = $region5
    $region4: #{live_city_train_step.1} parent=1 // pred_region
      _
    $region5: #{live_city_train_step.1} parent=1 // pred_fallthru
      _
    // Predicated region
    $region6: #{live_city_train_step.1} parent=1 // pred_check
      _
    $region7: #{live_city_train_step.1} parent=1 // pred_check_branch
      %15 = sbr.rel (0) target = $region9
    $region8: #{live_city_train_step.1} parent=1 // pred_region
      _
    $region9: #{live_city_train_step.1} parent=1 // pred_fallthru
      _
    // Predicated region
    $region10: #{live_city_train_step.1} parent=1 // pred_check
      _
    $region11: #{live_city_train_step.1} parent=1 // pred_check_branch
      %17 = sbr.rel (0) target = $region13
    $region12: #{live_city_train_step.1} parent=1 // pred_region
      _
    $region13: #{live_city_train_step.1} parent=1 // pred_fallthru
      _
    %v18 = vld [vmem:[%s0] sm:$0xff]
    %v19 = vld [vmem:[%s1] sm:$0xff]
    %v20 = vld [vmem:[%s1 + $0x8] sm:$0xff]
    %v21 = vld [vmem:[%s1 + $0x10] sm:$0x1]
    %vm22 = vcmask 138240
    %v24 = vsel %vm22, %v18, 0
    %vm26 = vcmask 1040384
    %v28 = vsel %vm26, %v21, 0
    %30 = vmatprep.subr.mxu0 0.0
    %31 = vmatpush1.msra.mxu0 %v19
    %32 = vmatprep.subr.mxu0 0.0
    %33 = vmatpush1.msra.mxu0 %v20
    %34 = vmatprep.subr.mxu0 0.0
    %35 = vmatpush1.msra.mxu0 %v28
    %36 = vmatprep.subr.mxu0 0.0
    %37 = vmatpush1.msra.mxu0 0.0
    %38 = vmatprep.subr.mxu0 0.0
    %39 = vmatpush1.msra.mxu0 0.0
    %40 = vmatprep.subr.mxu0 0.0
    %41 = vmatpush1.msra.mxu0 0.0
    %42 = vmatprep.subr.mxu0 0.0
    %43 = vmatpush1.msra.mxu0 0.0
    %44 = vmatprep.subr.mxu0 0.0
    %45 = vmatpush1.msra.mxu0 0.0
    %46 = vmatprep.subr.mxu0 0.0
    %47 = vmatpush1.msra.mxu0 0.0
    %48 = vmatprep.subr.mxu0 0.0
    %49 = vmatpush1.msra.mxu0 0.0
    %50 = vmatprep.subr.mxu0 0.0
    %51 = vmatpush1.msra.mxu0 0.0
    %52 = vmatprep.subr.mxu0 0.0
    %53 = vmatpush1.msra.mxu0 0.0
    %54 = vmatprep.subr.mxu0 0.0
    %55 = vmatpush1.msra.mxu0 0.0
    %56 = vmatprep.subr.mxu0 0.0
    %57 = vmatpush1.msra.mxu0 0.0
    %58 = vmatprep.subr.mxu0 0.0
    %59 = vmatpush1.msra.mxu0 0.0
    %60 = vmatprep.subr.mxu0 0.0
    %61 = vmatpush1.msra.mxu0 0.0
    %62 = vmatprep.subr.mxu0 0.0
    %63 = vmatpush1.msra.mxu0 0.0
    %64 = vmatprep.subr.mxu0 0.0
    %65 = vmatpush1.msra.mxu0 0.0
    %66 = vmatprep.subr.mxu0 0.0
    %67 = vmatpush1.msra.mxu0 0.0
    %68 = vmatprep.subr.mxu0 0.0
    %69 = vmatpush1.msra.mxu0 0.0
    %70 = vmatprep.subr.mxu0 0.0
    %71 = vmatpush1.msra.mxu0 0.0
    %72 = vmatprep.subr.mxu0 0.0
    %73 = vmatpush1.msra.mxu0 0.0
    %74 = vmatprep.subr.mxu0 0.0
    %75 = vmatpush1.msra.mxu0 0.0
    %76 = vmatprep.subr.mxu0 0.0
    %77 = vmatpush1.msra.mxu0 0.0
    %78 = vmatprep.subr.mxu0 0.0
    %79 = vmatpush1.msra.mxu0 0.0
    %80 = vmatprep.subr.mxu0 0.0
    %81 = vmatpush1.msra.mxu0 0.0
    %82 = vmatprep.subr.mxu0 0.0
    %83 = vmatpush1.msra.mxu0 0.0
    %84 = vmatprep.subr.mxu0 0.0
    %85 = vmatpush1.msra.mxu0 0.0
    %86 = vmatprep.subr.mxu0 0.0
    %87 = vmatpush1.msra.mxu0 0.0
    %88 = vmatprep.subr.mxu0 0.0
    %89 = vmatpush1.msra.mxu0 0.0
    %90 = vmatprep.subr.mxu0 0.0
    %91 = vmatpush1.msra.mxu0 0.0
    %92 = vmatprep.subr.mxu0 0.0
    %93 = vmatpush1.msra.mxu0 0.0
    %94 = vmatprep.mubr.f32.mxu0 0.0
    %95 = vmatmul.mubr.f32.gmra.mrb[0].mxu0 %v24
    %v96 = vpop.f32.mrb[0].mxu0
    %v97 = vadd.f32 0.0, %v96
    %v98 = vpop.f32.mrb[0].mxu0
    %99 = vdwg.mxu0
    %vm100 = vcmask 39936
    %v101 = vsel %vm100, %v97, -inf
    %102 = vmax.xlane.f32.xlu0 %v101
    %v103 = vpop.xlane.xlu0 %102
    %v104 = vsub.f32 %v97, %v103
    %v105 = vmul.f32 %v104, 1.442695
    %v106 = vpow.pop %v105
    %v107 = vsel %vm100, %v106, 0.0
    %108 = vadd.xlane.f32.xlu0 %v107
    %v109 = vpop.xlane.xlu0 %108
    %v110 = vrcp.pop %v109
    %v111 = vmul.f32 %v106, %v110
    %112 = vst.msk [vmem:[#allocation2] sm:$0xff] %vm100, %v111
    %v113 = vmul.f32 %v111, 1.442695
    %v114 = vpow.pop %v113
    %v115 = vsel %vm100, %v114, 0.0
    %116 = vadd.xlane.f32.xlu0 %v115
    %v117 = vpop.xlane.xlu0 %116
    %v118 = vlog2.pop %v117
    %v119 = vmul.f32 %v118, 0.6931472
    %v120 = vsub.f32 %v111, %v119
    %v121 = vlaneseq
    %v122 = vand.u32 %v121, 127
    %v123 = vld [vmem:[%s2] sm:$0xff]
    %124 = vset.pattern.permute.xlu0 0
    %125 = vperm.xlu0 %124, %v123
    %v126 = vpop.permute.xlu0 %125
    %vm127 = vcmp.eq.s32.totalorder %v122, %v126
    %v128 = vsel %vm127, 1, 0
    %v129 = vcvt.s32.f32 %v128
    %v130 = vmul.f32 %v129, %v120
    %v131 = vsel %vm100, %v130, 0.0
    %132 = vadd.xlane.f32.xlu0 %v131
    %v133 = vpop.xlane.xlu0 %132
    %v134 = vsub.f32 0.0, %v133
    %vm135 = vcmask 7168
    %v136 = vsel %vm135, %v134, 0.0
    %137 = vadd.xlane.f32.xlu0 %v136
    %v138 = vpop.xlane.xlu0 %137
    %v139 = vrot.slane %v138, 4
    %v140 = vadd.f32 %v138, %v139
    %v141 = vrot.slane %v140, 2
    %v142 = vadd.f32 %v140, %v141
    %v143 = vrot.slane %v142, 1
    %v144 = vadd.f32 %v142, %v143
    %s145 = vtos %v144
    %s146 = smul.f32 %s145, 0.125
    %s147 = scalar_lea.smem [#allocation5], 0
    %148 = sst [smem:[%s147]] %s146
    // Predicated region
    $region14: #{live_city_train_step.1} parent=1 // pred_check
      _
    $region15: #{live_city_train_step.1} parent=1 // pred_check_branch
      %150 = sbr.rel (0) target = $region17
    $region16: #{live_city_train_step.1} parent=1 // pred_region
      %s152 = ssub.s32 128, 128
      %153 = vsyncadd [#allocation3], %s152
      %s155 = sshll.u32 [#allocation2], 4
      %s156 = int_to_ptr.vmem [resolvable:$true] %s155
      %158 = dma.vmem_to_hbm [thread:$0]  %s156, 128, %s3, [#allocation3]
    $region17: #{live_city_train_step.1} parent=1 // pred_fallthru
      _
    // Predicated region
    $region18: #{live_city_train_step.1} parent=1 // pred_check
      _
    $region19: #{live_city_train_step.1} parent=1 // pred_check_branch
      %160 = sbr.rel (0) target = $region21
    $region20: #{live_city_train_step.1} parent=1 // pred_region
      %s162 = ssub.s32 16, 16
      %163 = vsyncadd [#allocation4], %s162
      %166 = dma.smem_to_hbm [#allocation5], 16, %s4, [#allocation4]
    $region21: #{live_city_train_step.1} parent=1 // pred_fallthru
      _
    // Predicated region
    $region22: #{live_city_train_step.1} parent=1 // pred_check
      _
    $region23: #{live_city_train_step.1} parent=1 // pred_check_branch
      %168 = sbr.rel (0) target = $region25
    $region24: #{live_city_train_step.1} parent=1 // pred_region
      %169 = dma.done [#allocation3], 128
    $region25: #{live_city_train_step.1} parent=1 // pred_fallthru
      _
    // Predicated region
    $region26: #{live_city_train_step.1} parent=1 // pred_check
      _
    $region27: #{live_city_train_step.1} parent=1 // pred_check_branch
      %171 = sbr.rel (0) target = $region29
    $region28: #{live_city_train_step.1} parent=1 // pred_region
      %172 = dma.done [#allocation4], 16
    $region29: #{live_city_train_step.1} parent=1 // pred_fallthru
      _
    %173 = sfence
    %174 = vsyncpa [#allocation3], 1
    %175 = vsyncpa [#allocation4], 1

</llo_original>
